<compile_context>
chip_gen: v5e
topology: v5e:2x2
jax: 0.10.0
libtpu: 0.0.40
codegen_flags: <defaults>
</compile_context>

<pallas_src>
import jax
import jax.numpy as jnp
from jax import lax
from jax.experimental import pallas as pl
from jax.experimental.pallas import tpu as pltpu

IGNORE_INDEX = -1


def _ce_loss_same_kernel(img_ref, txt_ref, sen_ref, tgt_ref, out_ref,
                         sum_acc, cnt_acc):
    """One M-tile: img/txt/sen_ref (TM, C), tgt_ref (TM, 1) int32, out (1, 1)."""
    i = pl.program_id(0)

    @pl.when(i == 0)
    def _init():
        sum_acc[...] = jnp.zeros_like(sum_acc)
        cnt_acc[...] = jnp.zeros_like(cnt_acc)

    tgt = tgt_ref[...]                                    # (TM, 1) int32
    valid = tgt != IGNORE_INDEX                           # (TM, 1) bool

    TM, C = img_ref.shape
    class_ids = lax.broadcasted_iota(jnp.int32, (TM, C), 1)
    onehot = class_ids == tgt                             # (TM, C)

    def per_input(x_ref):
        x = x_ref[...].astype(jnp.float32)                # cast in-kernel
        row_sum = jnp.sum(x, axis=-1, keepdims=True)      # == exp(logsumexp(log x))
        p_tgt = jnp.sum(jnp.where(onehot, x, 0.0), axis=-1, keepdims=True)
        # guard invalid rows so log never sees 0 there; they contribute 0
        safe_rs = jnp.where(valid, row_sum, 1.0)
        safe_pt = jnp.where(valid, p_tgt, 1.0)
        nll = jnp.log(safe_rs) - jnp.log(safe_pt)         # (TM, 1), 0 on invalid
        return jnp.sum(nll)

    tile_sum = per_input(img_ref) + per_input(txt_ref) + per_input(sen_ref)
    sum_acc[...] = sum_acc[...] + tile_sum
    cnt_acc[...] = cnt_acc[...] + jnp.sum(valid.astype(jnp.float32))

    @pl.when(i == pl.num_programs(0) - 1)
    def _finalize():
        out_ref[...] = sum_acc[...] / cnt_acc[...]        # single divide


def _choose_tm(M, C, itemsize):
    """Largest row-tile whose double-buffered working set stays ~< 8 MiB."""
    per_row = 3 * 2 * C * itemsize + 2 * 128 * 4          # 3 inputs + padded tgt
    tm = (8 * 1024 * 1024) // per_row
    tm = max(8, min(1024, (tm // 8) * 8))
    m_pad8 = ((M + 7) // 8) * 8
    return min(tm, m_pad8)


def ce_loss_same(outputs, target):
    """outputs: 3 arrays (N, *, C) of probabilities; target: (N, *) ints."""
    img, txt, sen = outputs
    C = img.shape[-1]
    img2 = img.reshape(-1, C)
    txt2 = txt.reshape(-1, C)
    sen2 = sen.reshape(-1, C)
    tgt1 = target.reshape(-1).astype(jnp.int32)
    M = img2.shape[0]

    itemsize = jnp.dtype(img2.dtype).itemsize
    TM = _choose_tm(M, C, itemsize)
    M_pad = pl.cdiv(M, TM) * TM
    if M_pad != M:
        pad = M_pad - M
        # pad inputs with 1.0 (log(1)=0) and targets with ignore_index
        img2 = jnp.pad(img2, ((0, pad), (0, 0)), constant_values=1.0)
        txt2 = jnp.pad(txt2, ((0, pad), (0, 0)), constant_values=1.0)
        sen2 = jnp.pad(sen2, ((0, pad), (0, 0)), constant_values=1.0)
        tgt1 = jnp.pad(tgt1, (0, pad), constant_values=IGNORE_INDEX)
    tgt2 = tgt1.reshape(-1, 1)

    grid = (M_pad // TM,)

    out = pl.pallas_call(
        _ce_loss_same_kernel,
        out_shape=jax.ShapeDtypeStruct((1, 1), jnp.float32),
        grid_spec=pltpu.PrefetchScalarGridSpec(
            num_scalar_prefetch=0,
            grid=grid,
            in_specs=[
                pl.BlockSpec((TM, C), lambda i: (i, 0)),
                pl.BlockSpec((TM, C), lambda i: (i, 0)),
                pl.BlockSpec((TM, C), lambda i: (i, 0)),
                pl.BlockSpec((TM, 1), lambda i: (i, 0)),
            ],
            out_specs=pl.BlockSpec((1, 1), lambda i: (0, 0)),
            scratch_shapes=[
                pltpu.VMEM((1, 1), jnp.float32),   # running nll sum (all 3)
                pltpu.VMEM((1, 1), jnp.float32),   # running valid-row count
            ],
        ),
        compiler_params=pltpu.CompilerParams(
            dimension_semantics=("arbitrary",),    # accumulation over M tiles
        ),
    )(img2, txt2, sen2, tgt2)
    return out[0, 0]


def _reference(outputs, target):
    """Pure-JAX reference matching PyTorch CrossEntropyLoss semantics."""
    tgt = target.reshape(-1).astype(jnp.int32)
    valid = tgt != IGNORE_INDEX
    count = jnp.sum(valid.astype(jnp.float32))

    def one(x):
        logits = jnp.log(x.reshape(-1, x.shape[-1]).astype(jnp.float32))
        logp = jax.nn.log_softmax(logits, axis=-1)
        safe_tgt = jnp.where(valid, tgt, 0)
        picked = jnp.take_along_axis(logp, safe_tgt[:, None], axis=-1)[:, 0]
        return jnp.sum(jnp.where(valid, -picked, 0.0)) / count

    return one(outputs[0]) + one(outputs[1]) + one(outputs[2])


if __name__ == "__main__":
    key = jax.random.PRNGKey(0)
    N, L, C = 2, 8, 32  # outputs: (N, L, C) probabilities; target: (N, L)
    k1, k2, k3, k4 = jax.random.split(key, 4)

    img = jax.nn.softmax(jax.random.normal(k1, (N, L, C), jnp.float32), axis=-1)
    txt = jax.nn.softmax(jax.random.normal(k2, (N, L, C), jnp.float32), axis=-1)
    sen = jax.nn.softmax(jax.random.normal(k3, (N, L, C), jnp.float32), axis=-1)

    target = jax.random.randint(k4, (N, L), 0, C, dtype=jnp.int32)
    # mark a couple of positions as ignore_index
    target = target.at[0, 0].set(IGNORE_INDEX).at[1, 3].set(IGNORE_INDEX)

    loss = ce_loss_same((img, txt, sen), target)
    jax.block_until_ready(loss)

    ref = _reference((img, txt, sen), target)
    assert jnp.allclose(loss, ref, rtol=1e-5, atol=1e-5), (loss, ref)

    print("KERNEL_OK")
</pallas_src>

<mosaic_0001>
module attributes {stable_mosaic.version = 11 : i64} {
  func.func @_ce_loss_same_kernel(%arg0: i32, %arg1: memref<16x32xf32, #tpu.memory_space<vmem>>, %arg2: memref<16x32xf32, #tpu.memory_space<vmem>>, %arg3: memref<16x32xf32, #tpu.memory_space<vmem>>, %arg4: memref<16x1xi32, #tpu.memory_space<vmem>>, %arg5: memref<1x1xf32, #tpu.memory_space<vmem>>, %arg6: memref<1x1xf32, #tpu.memory_space<vmem>>, %arg7: memref<1x1xf32, #tpu.memory_space<vmem>>) attributes {dimension_semantics = [#tpu.dimension_semantics<arbitrary>], iteration_bounds = array<i64: 1>, scalar_prefetch = 0 : i64, scratch_operands = 2 : i64, tpu.core_type = #tpu.core_type<tc>, window_params = [{transform_indices = @transform_0, window_bounds = array<i64: 16, 32>}, {transform_indices = @transform_1, window_bounds = array<i64: 16, 32>}, {transform_indices = @transform_2, window_bounds = array<i64: 16, 32>}, {transform_indices = @transform_3, window_bounds = array<i64: 16, 1>}, {pipeline_mode = #tpu.pipeline_mode<synchronous>, transform_indices = @transform_4, window_bounds = array<i64: 1, 1>}]} {
    %c0_i32 = arith.constant 0 : i32
    %0 = arith.cmpi eq, %arg0, %c0_i32 : i32
    %1 = arith.extui %0 : i1 to i32
    %c0_i32_0 = arith.constant 0 : i32
    %2 = arith.cmpi ne, %1, %c0_i32_0 : i32
    scf.if %2 {
      %cst_36 = arith.constant 0.000000e+00 : f32
      %82 = vector.broadcast %cst_36 : f32 to vector<1x1xf32>
      %c0_37 = arith.constant 0 : index
      %c0_38 = arith.constant 0 : index
      %83 = vector.load %arg6[%c0_37, %c0_38] : memref<1x1xf32, #tpu.memory_space<vmem>>, vector<1x1xf32>
      tpu.vector_store %arg6[%c0_37, %c0_38], %82 {strides = array<i32>} : memref<1x1xf32, #tpu.memory_space<vmem>>, vector<1x1xf32>,
      %cst_39 = arith.constant 0.000000e+00 : f32
      %84 = vector.broadcast %cst_39 : f32 to vector<1x1xf32>
      %c0_40 = arith.constant 0 : index
      %c0_41 = arith.constant 0 : index
      %85 = vector.load %arg7[%c0_40, %c0_41] : memref<1x1xf32, #tpu.memory_space<vmem>>, vector<1x1xf32>
      tpu.vector_store %arg7[%c0_40, %c0_41], %84 {strides = array<i32>} : memref<1x1xf32, #tpu.memory_space<vmem>>, vector<1x1xf32>,
    } else {
    }
    %c0 = arith.constant 0 : index
    %c0_1 = arith.constant 0 : index
    %3 = vector.load %arg4[%c0, %c0_1] : memref<16x1xi32, #tpu.memory_space<vmem>>, vector<16x1xi32>
    %c-1_i32 = arith.constant -1 : i32
    %4 = vector.broadcast %c-1_i32 : i32 to vector<16x1xi32>
    %5 = arith.cmpi ne, %3, %4 : vector<16x1xi32>
    %6 = tpu.iota {dimensions = array<i32: 1>} : vector<16x32xi32>
    %7 = vector.broadcast %3 : vector<16x1xi32> to vector<16x32xi32>
    %8 = arith.cmpi eq, %6, %7 : vector<16x32xi32>
    %c0_2 = arith.constant 0 : index
    %c0_3 = arith.constant 0 : index
    %9 = vector.load %arg1[%c0_2, %c0_3] : memref<16x32xf32, #tpu.memory_space<vmem>>, vector<16x32xf32>
    %cst = arith.constant dense<0.000000e+00> : vector<16xf32>
    %10 = vector.multi_reduction <add>, %9, %cst [1] : vector<16x32xf32> to vector<16xf32>
    %11 = vector.shape_cast %10 : vector<16xf32> to vector<16x1xf32>
    %cst_4 = arith.constant 0.000000e+00 : f32
    %12 = vector.broadcast %cst_4 : f32 to vector<16x32xf32>
    %13 = arith.select %8, %9, %12 : vector<16x32xi1>, vector<16x32xf32>
    %cst_5 = arith.constant dense<0.000000e+00> : vector<16xf32>
    %14 = vector.multi_reduction <add>, %13, %cst_5 [1] : vector<16x32xf32> to vector<16xf32>
    %15 = vector.shape_cast %14 : vector<16xf32> to vector<16x1xf32>
    %cst_6 = arith.constant 1.000000e+00 : f32
    %16 = vector.broadcast %cst_6 : f32 to vector<16x1xf32>
    %17 = arith.select %5, %11, %16 : vector<16x1xi1>, vector<16x1xf32>
    %cst_7 = arith.constant 1.000000e+00 : f32
    %18 = vector.broadcast %cst_7 : f32 to vector<16x1xf32>
    %19 = arith.select %5, %15, %18 : vector<16x1xi1>, vector<16x1xf32>
    %20 = math.log %17 : vector<16x1xf32>
    %21 = math.log %19 : vector<16x1xf32>
    %22 = arith.subf %20, %21 : vector<16x1xf32>
    %23 = vector.shape_cast %22 : vector<16x1xf32> to vector<1x16x1xf32>
    %cst_8 = arith.constant dense<0.000000e+00> : vector<1xf32>
    %24 = vector.multi_reduction <add>, %23, %cst_8 [1, 2] : vector<1x16x1xf32> to vector<1xf32>
    %25 = vector.shape_cast %24 : vector<1xf32> to vector<1x1x1xf32>
    %26 = vector.extract %25[0, 0, 0] : f32 from vector<1x1x1xf32>
    %c0_9 = arith.constant 0 : index
    %c0_10 = arith.constant 0 : index
    %27 = vector.load %arg2[%c0_9, %c0_10] : memref<16x32xf32, #tpu.memory_space<vmem>>, vector<16x32xf32>
    %cst_11 = arith.constant dense<0.000000e+00> : vector<16xf32>
    %28 = vector.multi_reduction <add>, %27, %cst_11 [1] : vector<16x32xf32> to vector<16xf32>
    %29 = vector.shape_cast %28 : vector<16xf32> to vector<16x1xf32>
    %cst_12 = arith.constant 0.000000e+00 : f32
    %30 = vector.broadcast %cst_12 : f32 to vector<16x32xf32>
    %31 = arith.select %8, %27, %30 : vector<16x32xi1>, vector<16x32xf32>
    %cst_13 = arith.constant dense<0.000000e+00> : vector<16xf32>
    %32 = vector.multi_reduction <add>, %31, %cst_13 [1] : vector<16x32xf32> to vector<16xf32>
    %33 = vector.shape_cast %32 : vector<16xf32> to vector<16x1xf32>
    %cst_14 = arith.constant 1.000000e+00 : f32
    %34 = vector.broadcast %cst_14 : f32 to vector<16x1xf32>
    %35 = arith.select %5, %29, %34 : vector<16x1xi1>, vector<16x1xf32>
    %cst_15 = arith.constant 1.000000e+00 : f32
    %36 = vector.broadcast %cst_15 : f32 to vector<16x1xf32>
    %37 = arith.select %5, %33, %36 : vector<16x1xi1>, vector<16x1xf32>
    %38 = math.log %35 : vector<16x1xf32>
    %39 = math.log %37 : vector<16x1xf32>
    %40 = arith.subf %38, %39 : vector<16x1xf32>
    %41 = vector.shape_cast %40 : vector<16x1xf32> to vector<1x16x1xf32>
    %cst_16 = arith.constant dense<0.000000e+00> : vector<1xf32>
    %42 = vector.multi_reduction <add>, %41, %cst_16 [1, 2] : vector<1x16x1xf32> to vector<1xf32>
    %43 = vector.shape_cast %42 : vector<1xf32> to vector<1x1x1xf32>
    %44 = vector.extract %43[0, 0, 0] : f32 from vector<1x1x1xf32>
    %45 = arith.addf %26, %44 : f32
    %c0_17 = arith.constant 0 : index
    %c0_18 = arith.constant 0 : index
    %46 = vector.load %arg3[%c0_17, %c0_18] : memref<16x32xf32, #tpu.memory_space<vmem>>, vector<16x32xf32>
    %cst_19 = arith.constant dense<0.000000e+00> : vector<16xf32>
    %47 = vector.multi_reduction <add>, %46, %cst_19 [1] : vector<16x32xf32> to vector<16xf32>
    %48 = vector.shape_cast %47 : vector<16xf32> to vector<16x1xf32>
    %cst_20 = arith.constant 0.000000e+00 : f32
    %49 = vector.broadcast %cst_20 : f32 to vector<16x32xf32>
    %50 = arith.select %8, %46, %49 : vector<16x32xi1>, vector<16x32xf32>
    %cst_21 = arith.constant dense<0.000000e+00> : vector<16xf32>
    %51 = vector.multi_reduction <add>, %50, %cst_21 [1] : vector<16x32xf32> to vector<16xf32>
    %52 = vector.shape_cast %51 : vector<16xf32> to vector<16x1xf32>
    %cst_22 = arith.constant 1.000000e+00 : f32
    %53 = vector.broadcast %cst_22 : f32 to vector<16x1xf32>
    %54 = arith.select %5, %48, %53 : vector<16x1xi1>, vector<16x1xf32>
    %cst_23 = arith.constant 1.000000e+00 : f32
    %55 = vector.broadcast %cst_23 : f32 to vector<16x1xf32>
    %56 = arith.select %5, %52, %55 : vector<16x1xi1>, vector<16x1xf32>
    %57 = math.log %54 : vector<16x1xf32>
    %58 = math.log %56 : vector<16x1xf32>
    %59 = arith.subf %57, %58 : vector<16x1xf32>
    %60 = vector.shape_cast %59 : vector<16x1xf32> to vector<1x16x1xf32>
    %cst_24 = arith.constant dense<0.000000e+00> : vector<1xf32>
    %61 = vector.multi_reduction <add>, %60, %cst_24 [1, 2] : vector<1x16x1xf32> to vector<1xf32>
    %62 = vector.shape_cast %61 : vector<1xf32> to vector<1x1x1xf32>
    %63 = vector.extract %62[0, 0, 0] : f32 from vector<1x1x1xf32>
    %64 = arith.addf %45, %63 : f32
    %c0_25 = arith.constant 0 : index
    %c0_26 = arith.constant 0 : index
    %65 = vector.load %arg6[%c0_25, %c0_26] : memref<1x1xf32, #tpu.memory_space<vmem>>, vector<1x1xf32>
    %66 = vector.broadcast %64 : f32 to vector<1x1xf32>
    %67 = arith.addf %65, %66 : vector<1x1xf32>
    %c0_27 = arith.constant 0 : index
    %c0_28 = arith.constant 0 : index
    %68 = vector.load %arg6[%c0_27, %c0_28] : memref<1x1xf32, #tpu.memory_space<vmem>>, vector<1x1xf32>
    tpu.vector_store %arg6[%c0_27, %c0_28], %67 {strides = array<i32>} : memref<1x1xf32, #tpu.memory_space<vmem>>, vector<1x1xf32>,
    %c0_29 = arith.constant 0 : index
    %c0_30 = arith.constant 0 : index
    %69 = vector.load %arg7[%c0_29, %c0_30] : memref<1x1xf32, #tpu.memory_space<vmem>>, vector<1x1xf32>
    %70 = arith.extui %5 : vector<16x1xi1> to vector<16x1xi32>
    %71 = arith.sitofp %70 : vector<16x1xi32> to vector<16x1xf32>
    %72 = vector.shape_cast %71 : vector<16x1xf32> to vector<1x16x1xf32>
    %cst_31 = arith.constant dense<0.000000e+00> : vector<1xf32>
    %73 = vector.multi_reduction <add>, %72, %cst_31 [1, 2] : vector<1x16x1xf32> to vector<1xf32>
    %74 = vector.shape_cast %73 : vector<1xf32> to vector<1x1x1xf32>
    %75 = vector.extract %74[0, 0, 0] : f32 from vector<1x1x1xf32>
    %76 = vector.broadcast %75 : f32 to vector<1x1xf32>
    %77 = arith.addf %69, %76 : vector<1x1xf32>
    %c0_32 = arith.constant 0 : index
    %c0_33 = arith.constant 0 : index
    %78 = vector.load %arg7[%c0_32, %c0_33] : memref<1x1xf32, #tpu.memory_space<vmem>>, vector<1x1xf32>
    tpu.vector_store %arg7[%c0_32, %c0_33], %77 {strides = array<i32>} : memref<1x1xf32, #tpu.memory_space<vmem>>, vector<1x1xf32>,
    %c0_i32_34 = arith.constant 0 : i32
    %79 = arith.cmpi eq, %arg0, %c0_i32_34 : i32
    %80 = arith.extui %79 : i1 to i32
    %c0_i32_35 = arith.constant 0 : i32
    %81 = arith.cmpi ne, %80, %c0_i32_35 : i32
    scf.if %81 {
      %c0_36 = arith.constant 0 : index
      %c0_37 = arith.constant 0 : index
      %82 = vector.load %arg6[%c0_36, %c0_37] : memref<1x1xf32, #tpu.memory_space<vmem>>, vector<1x1xf32>
      %c0_38 = arith.constant 0 : index
      %c0_39 = arith.constant 0 : index
      %83 = vector.load %arg7[%c0_38, %c0_39] : memref<1x1xf32, #tpu.memory_space<vmem>>, vector<1x1xf32>
      %84 = arith.divf %82, %83 : vector<1x1xf32>
      %c0_40 = arith.constant 0 : index
      %c0_41 = arith.constant 0 : index
      %85 = vector.load %arg5[%c0_40, %c0_41] : memref<1x1xf32, #tpu.memory_space<vmem>>, vector<1x1xf32>
      tpu.vector_store %arg5[%c0_40, %c0_41], %84 {strides = array<i32>} : memref<1x1xf32, #tpu.memory_space<vmem>>, vector<1x1xf32>,
    } else {
    }
    return
  }
  func.func @transform_0(%arg0: i32) -> (i32, i32) {
    %c0_i32 = arith.constant 0 : i32
    %c0_i32_0 = arith.constant 0 : i32
    return %arg0, %c0_i32 : i32, i32
  }
  func.func @transform_1(%arg0: i32) -> (i32, i32) {
    %c0_i32 = arith.constant 0 : i32
    %c0_i32_0 = arith.constant 0 : i32
    return %arg0, %c0_i32 : i32, i32
  }
  func.func @transform_2(%arg0: i32) -> (i32, i32) {
    %c0_i32 = arith.constant 0 : i32
    %c0_i32_0 = arith.constant 0 : i32
    return %arg0, %c0_i32 : i32, i32
  }
  func.func @transform_3(%arg0: i32) -> (i32, i32) {
    %c0_i32 = arith.constant 0 : i32
    %c0_i32_0 = arith.constant 0 : i32
    return %arg0, %c0_i32 : i32, i32
  }
  func.func @transform_4(%arg0: i32) -> (i32, i32) {
    %c0_i32 = arith.constant 0 : i32
    %c0_i32_0 = arith.constant 0 : i32
    %c0_i32_1 = arith.constant 0 : i32
    return %c0_i32, %c0_i32_0 : i32, i32
  }
}

</mosaic_0001>

<llo_original>
// kernel: tpu_custom_call.1
$region0: #{tpu_custom_call.1}
  #allocation0 [shape = 'u32[]', space=smem, size = 0x4, offset = 0x4, fixed_abs, tag = 'smem constant byte address 0x4 - core index']
  #allocation1 [shape = 'u32[72,128]{1,0:T(1,128)}', space=vmem, size = 0x9000, scoped, tag = 'internal scratch']
  #allocation2 [shape = 'f32[1,1]{1,0:T(1,128)}', space=vmem, size = 0x200, scoped, tag = 'scratch operand']
  #allocation3 [shape = 'f32[1,1]{1,0:T(1,128)}', space=vmem, size = 0x200, scoped, tag = 'scratch operand']
  %s0 = inlined_call_operand.vmem [shape: f32[16,32], index: 0, kind: input, shape index: {}]
  %s1 = inlined_call_operand.hbm [shape: f32[16,32], index: 1, kind: input, shape index: {}]
  %s2 = inlined_call_operand.hbm [shape: f32[16,32], index: 2, kind: input, shape index: {}]
  %s3 = inlined_call_operand.vmem [shape: s32[16,1], index: 3, kind: input, shape index: {}]
  %s4 = inlined_call_operand.hbm [shape: f32[1,1], index: 4, kind: output, shape index: {}]
  %s5 = sld [smem:[#allocation0]]
  $region42: #{tpu_custom_call.1} parent=0
    _
  %s7 = ssub.s32 1, %s5
  %s8 = scalar_select 0, %s7, %s5
  $region1: #{tpu_custom_call.1} parent=0
    #allocation4 [shape = 'u8[8192]{0}', space=vmem, size = 0x2000, scoped, tag = 'input window, operand 1, single buffered']
    #allocation5 [shape = 's32[1]{0}', space=sflag, size = 0x4, scoped, tag = 'scoped memory for tpu_custom_call.1']
    #allocation6 [shape = 's32[1]{0}', space=sflag, size = 0x4, scoped, tag = 'scoped memory for tpu_custom_call.1']
    #allocation7 [shape = 'u8[8192]{0}', space=vmem, size = 0x2000, scoped, tag = 'input window, operand 2, single buffered']
    #allocation8 [shape = 's32[1]{0}', space=sflag, size = 0x4, scoped, tag = 'scoped memory for tpu_custom_call.1']
    #allocation9 [shape = 'u8[512]{0}', space=vmem, size = 0x400, scoped, tag = 'output window, operand 0, single buffered']
    %9 = vsyncpa [#allocation5], 0
    %10 = vsyncpa [#allocation8], 0
    %11 = vsyncpa [#allocation6], 0
    // Predicated region
    $region2: #{tpu_custom_call.1} parent=1 // pred_check
      _
    $region3: #{tpu_custom_call.1} parent=1 // pred_check_branch
      %13 = sbr.rel (0) target = $region5
    $region4: #{tpu_custom_call.1} parent=1 // pred_region
      _
    $region5: #{tpu_custom_call.1} parent=1 // pred_fallthru
      _
    // Predicated region
    $region6: #{tpu_custom_call.1} parent=1 // pred_check
      _
    $region7: #{tpu_custom_call.1} parent=1 // pred_check_branch
      %15 = sbr.rel (0) target = $region9
    $region8: #{tpu_custom_call.1} parent=1 // pred_region
      %17 = vsyncadd [#allocation5], 0
      %s18 = sshll.u32 %s1, 4
      %s19 = int_to_ptr.hbm [resolvable:$true] %s18
      %s20 = sshll.u32 [#allocation4], 4
      %s21 = int_to_ptr.vmem [resolvable:$true] %s20
      %26 = dma.hbm_to_vmem [thread:$0]  %s19, 256, %s21, [#allocation5], 128, 128, 8
    $region9: #{tpu_custom_call.1} parent=1 // pred_fallthru
      _
    // Predicated region
    $region10: #{tpu_custom_call.1} parent=1 // pred_check
      _
    $region11: #{tpu_custom_call.1} parent=1 // pred_check_branch
      %28 = sbr.rel (0) target = $region13
    $region12: #{tpu_custom_call.1} parent=1 // pred_region
      %30 = vsyncadd [#allocation8], 0
      %s31 = sshll.u32 %s2, 4
      %s32 = int_to_ptr.hbm [resolvable:$true] %s31
      %s33 = sshll.u32 [#allocation7], 4
      %s34 = int_to_ptr.vmem [resolvable:$true] %s33
      %39 = dma.hbm_to_vmem [thread:$0]  %s32, 256, %s34, [#allocation8], 128, 128, 8
    $region13: #{tpu_custom_call.1} parent=1 // pred_fallthru
      _
    // Predicated region
    $region14: #{tpu_custom_call.1} parent=1 // pred_check
      _
    $region15: #{tpu_custom_call.1} parent=1 // pred_check_branch
      %41 = sbr.rel (0) target = $region17
    $region16: #{tpu_custom_call.1} parent=1 // pred_region
      _
    $region17: #{tpu_custom_call.1} parent=1 // pred_fallthru
      _
    // Predicated region
    $region18: #{tpu_custom_call.1} parent=1 // pred_check
      _
    $region19: #{tpu_custom_call.1} parent=1 // pred_check_branch
      %43 = sbr.rel (0) target = $region21
    $region20: #{tpu_custom_call.1} parent=1 // pred_region
      %45 = dma.done [#allocation5], 256
    $region21: #{tpu_custom_call.1} parent=1 // pred_fallthru
      _
    // Predicated region
    $region22: #{tpu_custom_call.1} parent=1 // pred_check
      _
    $region23: #{tpu_custom_call.1} parent=1 // pred_check_branch
      %47 = sbr.rel (0) target = $region25
    $region24: #{tpu_custom_call.1} parent=1 // pred_region
      %49 = dma.done [#allocation8], 256
    $region25: #{tpu_custom_call.1} parent=1 // pred_fallthru
      _
    %p50 = scmp.eq.s32.totalorder 0, 0
    // Predicated region
    $region26: #{tpu_custom_call.1} parent=1 // pred_check
      %p51 = pneg %p50
    $region27: #{tpu_custom_call.1} parent=1 // pred_check_branch
      %53 = sbr.rel (%p51) target = $region29
    $region28: #{tpu_custom_call.1} parent=1 // pred_region
      %vm54 = vcmask 0
      %55 = vst.msk [vmem:[#allocation2] sm:$0x1] %vm54, 0.0
      %56 = vst.msk [vmem:[#allocation3] sm:$0x1] %vm54, 0.0
    $region29: #{tpu_custom_call.1} parent=1 // pred_fallthru
      _
    %v57 = vld [vmem:[%s3] sm:$0xff]
    %v58 = vld [vmem:[%s3 + $0x8] sm:$0xff]
    %vm59 = vcmp.ne.s32.totalorder %v57, 4294967295
    %vm60 = vcmp.ne.s32.totalorder %v58, 4294967295
    %v61 = vlaneseq
    %v62 = vand.u32 %v61, 127
    %63 = vset.pattern.permute.xlu0 0
    %64 = vperm.xlu0 %63, %v57
    %v65 = vpop.permute.xlu0 %64
    %66 = vset.pattern.permute.xlu0 0
    %67 = vperm.xlu0 %66, %v58
    %v68 = vpop.permute.xlu0 %67
    %vm69 = vcmp.eq.s32.totalorder %v62, %v65
    %vm70 = vcmp.eq.s32.totalorder %v62, %v68
    %v71 = vld [vmem:[%s0] sm:$0xff]
    %v72 = vld [vmem:[%s0 + $0x8] sm:$0xff]
    %vm73 = vcmask 261120
    %v74 = vsel %vm73, %v71, 0.0
    %75 = vadd.xlane.f32.xlu0 %v74
    %v76 = vpop.xlane.xlu0 %75
    %v77 = vsel %vm73, %v72, 0.0
    %78 = vadd.xlane.f32.xlu0 %v77
    %v79 = vpop.xlane.xlu0 %78
    %v80 = vsel %vm69, %v71, 0.0
    %v81 = vsel %vm70, %v72, 0.0
    %v82 = vsel %vm73, %v80, 0.0
    %83 = vadd.xlane.f32.xlu0 %v82
    %v84 = vpop.xlane.xlu0 %83
    %v85 = vsel %vm73, %v81, 0.0
    %86 = vadd.xlane.f32.xlu0 %v85
    %v87 = vpop.xlane.xlu0 %86
    %v88 = vsel %vm59, %v76, 1.0
    %v89 = vsel %vm60, %v79, 1.0
    %v90 = vsel %vm59, %v84, 1.0
    %v91 = vsel %vm60, %v87, 1.0
    %v92 = vlog2.pop %v88
    %v93 = vmul.f32 %v92, 0.6931472
    %v94 = vlog2.pop %v89
    %v95 = vmul.f32 %v94, 0.6931472
    %v96 = vlog2.pop %v90
    %v97 = vmul.f32 %v96, 0.6931472
    %v98 = vlog2.pop %v91
    %v99 = vmul.f32 %v98, 0.6931472
    %v100 = vsub.f32 %v93, %v97
    %v101 = vsub.f32 %v95, %v99
    %vm102 = vcmask 7168
    %v103 = vsel %vm102, %v100, 0.0
    %v104 = vsel %vm102, %v101, 0.0
    %v105 = vadd.f32 %v103, %v104
    %106 = vadd.xlane.f32.xlu0 %v105
    %v107 = vpop.xlane.xlu0 %106
    %v108 = vrot.slane %v107, 4
    %v109 = vadd.f32 %v107, %v108
    %v110 = vrot.slane %v109, 2
    %v111 = vadd.f32 %v109, %v110
    %v112 = vrot.slane %v111, 1
    %v113 = vadd.f32 %v111, %v112
    %s114 = vtos %v113
    %v115 = vld [vmem:[#allocation4] sm:$0xff]
    %v116 = vld [vmem:[#allocation4 + $0x8] sm:$0xff]
    %v117 = vsel %vm73, %v115, 0.0
    %118 = vadd.xlane.f32.xlu0 %v117
    %v119 = vpop.xlane.xlu0 %118
    %v120 = vsel %vm73, %v116, 0.0
    %121 = vadd.xlane.f32.xlu0 %v120
    %v122 = vpop.xlane.xlu0 %121
    %v123 = vsel %vm69, %v115, 0.0
    %v124 = vsel %vm70, %v116, 0.0
    %v125 = vsel %vm73, %v123, 0.0
    %126 = vadd.xlane.f32.xlu0 %v125
    %v127 = vpop.xlane.xlu0 %126
    %v128 = vsel %vm73, %v124, 0.0
    %129 = vadd.xlane.f32.xlu0 %v128
    %v130 = vpop.xlane.xlu0 %129
    %v131 = vsel %vm59, %v119, 1.0
    %v132 = vsel %vm60, %v122, 1.0
    %v133 = vsel %vm59, %v127, 1.0
    %v134 = vsel %vm60, %v130, 1.0
    %v135 = vlog2.pop %v131
    %v136 = vmul.f32 %v135, 0.6931472
    %v137 = vlog2.pop %v132
    %v138 = vmul.f32 %v137, 0.6931472
    %v139 = vlog2.pop %v133
    %v140 = vmul.f32 %v139, 0.6931472
    %v141 = vlog2.pop %v134
    %v142 = vmul.f32 %v141, 0.6931472
    %v143 = vsub.f32 %v136, %v140
    %v144 = vsub.f32 %v138, %v142
    %v145 = vsel %vm102, %v143, 0.0
    %v146 = vsel %vm102, %v144, 0.0
    %v147 = vadd.f32 %v145, %v146
    %148 = vadd.xlane.f32.xlu0 %v147
    %v149 = vpop.xlane.xlu0 %148
    %v150 = vrot.slane %v149, 4
    %v151 = vadd.f32 %v149, %v150
    %v152 = vrot.slane %v151, 2
    %v153 = vadd.f32 %v151, %v152
    %v154 = vrot.slane %v153, 1
    %v155 = vadd.f32 %v153, %v154
    %s156 = vtos %v155
    %s157 = sadd.f32 %s114, %s156
    %v158 = vld [vmem:[#allocation7] sm:$0xff]
    %v159 = vld [vmem:[#allocation7 + $0x8] sm:$0xff]
    %v160 = vsel %vm73, %v158, 0.0
    %161 = vadd.xlane.f32.xlu0 %v160
    %v162 = vpop.xlane.xlu0 %161
    %v163 = vsel %vm73, %v159, 0.0
    %164 = vadd.xlane.f32.xlu0 %v163
    %v165 = vpop.xlane.xlu0 %164
    %v166 = vsel %vm69, %v158, 0.0
    %v167 = vsel %vm70, %v159, 0.0
    %v168 = vsel %vm73, %v166, 0.0
    %169 = vadd.xlane.f32.xlu0 %v168
    %v170 = vpop.xlane.xlu0 %169
    %v171 = vsel %vm73, %v167, 0.0
    %172 = vadd.xlane.f32.xlu0 %v171
    %v173 = vpop.xlane.xlu0 %172
    %v174 = vsel %vm59, %v162, 1.0
    %v175 = vsel %vm60, %v165, 1.0
    %v176 = vsel %vm59, %v170, 1.0
    %v177 = vsel %vm60, %v173, 1.0
    %v178 = vlog2.pop %v174
    %v179 = vmul.f32 %v178, 0.6931472
    %v180 = vlog2.pop %v175
    %v181 = vmul.f32 %v180, 0.6931472
    %v182 = vlog2.pop %v176
    %v183 = vmul.f32 %v182, 0.6931472
    %v184 = vlog2.pop %v177
    %v185 = vmul.f32 %v184, 0.6931472
    %v186 = vsub.f32 %v179, %v183
    %v187 = vsub.f32 %v181, %v185
    %v188 = vsel %vm102, %v186, 0.0
    %v189 = vsel %vm102, %v187, 0.0
    %v190 = vadd.f32 %v188, %v189
    %191 = vadd.xlane.f32.xlu0 %v190
    %v192 = vpop.xlane.xlu0 %191
    %v193 = vrot.slane %v192, 4
    %v194 = vadd.f32 %v192, %v193
    %v195 = vrot.slane %v194, 2
    %v196 = vadd.f32 %v194, %v195
    %v197 = vrot.slane %v196, 1
    %v198 = vadd.f32 %v196, %v197
    %s199 = vtos %v198
    %s200 = sadd.f32 %s157, %s199
    %v201 = vld [vmem:[#allocation2] sm:$0x1]
    %v202 = vstv %s200
    %v203 = vadd.f32 %v201, %v202
    %vm204 = vcmask 0
    %205 = vst.msk [vmem:[#allocation2] sm:$0x1] %vm204, %v203
    %v206 = vld [vmem:[#allocation3] sm:$0x1]
    %v207 = vsel %vm59, 1, 0
    %v208 = vsel %vm60, 1, 0
    %v209 = vcvt.s32.f32 %v207
    %v210 = vcvt.s32.f32 %v208
    %v211 = vsel %vm102, %v209, 0.0
    %v212 = vsel %vm102, %v210, 0.0
    %v213 = vadd.f32 %v211, %v212
    %214 = vadd.xlane.f32.xlu0 %v213
    %v215 = vpop.xlane.xlu0 %214
    %v216 = vrot.slane %v215, 4
    %v217 = vadd.f32 %v215, %v216
    %v218 = vrot.slane %v217, 2
    %v219 = vadd.f32 %v217, %v218
    %v220 = vrot.slane %v219, 1
    %v221 = vadd.f32 %v219, %v220
    %s222 = vtos %v221
    %v223 = vstv %s222
    %v224 = vadd.f32 %v206, %v223
    %225 = vst.msk [vmem:[#allocation3] sm:$0x1] %vm204, %v224
    // Predicated region
    $region30: #{tpu_custom_call.1} parent=1 // pred_check
      %p226 = pneg %p50
    $region31: #{tpu_custom_call.1} parent=1 // pred_check_branch
      %228 = sbr.rel (%p226) target = $region33
    $region32: #{tpu_custom_call.1} parent=1 // pred_region
      %v229 = vld [vmem:[#allocation2] sm:$0x1]
      %v230 = vld [vmem:[#allocation3] sm:$0x1]
      %v231 = vrcp.pop %v230
      %v232 = vmul.f32 %v230, %v231
      %v233 = vsub.f32 1.0, %v232
      %v234 = vmul.f32 %v231, %v233
      %v235 = vadd.f32 %v231, %v234
      %vm236 = vweird.f32 %v230
      %vm237 = vweird.f32 %v231
      %vm238 = vmor %vm236, %vm237
      %v239 = vsel %vm238, %v231, %v235
      %v240 = vand.u32 2147483647, %v230
      %vm241 = vcmp.eq.f32.partialorder %v240, 8.507059e+37
      %v242 = vand.u32 %v230, 2147483648
      %v243 = vor.u32 1.1754944e-38, %v242
      %v244 = vsel %vm241, %v243, %v239
      %v245 = vmul.f32 %v229, %v244
      %246 = vst.msk [vmem:[#allocation9] sm:$0x1] %vm204, %v245
    $region33: #{tpu_custom_call.1} parent=1 // pred_fallthru
      _
    // Predicated region
    $region34: #{tpu_custom_call.1} parent=1 // pred_check
      _
    $region35: #{tpu_custom_call.1} parent=1 // pred_check_branch
      %248 = sbr.rel (0) target = $region37
    $region36: #{tpu_custom_call.1} parent=1 // pred_region
      %250 = vsyncadd [#allocation6], 0
      %s252 = sshll.u32 [#allocation9], 4
      %s253 = int_to_ptr.vmem [resolvable:$true] %s252
      %s254 = sshll.u32 %s4, 4
      %s255 = int_to_ptr.hbm [resolvable:$true] %s254
      %257 = dma.vmem_to_hbm [thread:$0]  %s253, 16, %s255, [#allocation6]
    $region37: #{tpu_custom_call.1} parent=1 // pred_fallthru
      _
    // Predicated region
    $region38: #{tpu_custom_call.1} parent=1 // pred_check
      _
    $region39: #{tpu_custom_call.1} parent=1 // pred_check_branch
      %259 = sbr.rel (0) target = $region41
    $region40: #{tpu_custom_call.1} parent=1 // pred_region
      %261 = dma.done [#allocation6], 16
    $region41: #{tpu_custom_call.1} parent=1 // pred_fallthru
      _
    %262 = vsyncpa [#allocation5], 1
    %263 = vsyncpa [#allocation8], 1
    %264 = vsyncpa [#allocation6], 1

</llo_original>
